<compile_context>
chip_gen: v6e
topology: v6e:2x2x1
jax: 0.10.0
libtpu: 0.0.40
codegen_flags: <defaults>
</compile_context>

<pallas_src>
import functools

import jax
import jax.numpy as jnp
from jax.experimental import pallas as pl
from jax.experimental.pallas import tpu as pltpu


# ------------------------------- kernels ------------------------------------

def _kernel_nonlinear(x_ref, eblk_ref, bias_ref, w_ref, o_ref, *,
                      decoder_activation, gelu_approximate):
    # x_ref:(tm, G*KD)  eblk_ref:(G*KD, G*KR)  bias_ref:(1, G*KR)  w_ref:(G*KR, G*E)
    e = jnp.dot(x_ref[...], eblk_ref[...], preferred_element_type=jnp.float32)
    e = e + bias_ref[...].astype(jnp.float32)
    if decoder_activation == 'relu':
        e = jnp.maximum(e, 0.0)
    elif decoder_activation == 'gelu':
        e = jax.nn.gelu(e, approximate=gelu_approximate)
    else:
        raise ValueError(f'decoder_activation {decoder_activation} not supported')
    if w_ref.dtype == jnp.float32:
        o = jnp.dot(e, w_ref[...], preferred_element_type=jnp.float32)
    else:  # bf16 streaming: feed the MXU its native input type
        o = jnp.dot(e.astype(w_ref.dtype), w_ref[...],
                    preferred_element_type=jnp.float32)
    o_ref[...] = o.astype(o_ref.dtype)


def _kernel_linear(x_ref, w_ref, o_ref):
    # x_ref:(tm, G*KD)  w_ref:(G*KD, G*E)   (embedding folded into w)
    o_ref[...] = jnp.dot(x_ref[...], w_ref[...],
                         preferred_element_type=jnp.float32).astype(o_ref.dtype)


# ----------------------------- sizing helpers --------------------------------

_ROW_ALIGN = 256
_MAX_TM = 16384


def _vmem_capacity_bytes():
    try:
        return int(pltpu.get_tpu_info().vmem_capacity_bytes)
    except Exception:
        return 64 << 20  # conservative (v7x-sized) fallback


def _pick_g(M, E, KD, KR, itemsize, resident_budget):
    """Largest lane-fold G with G | M and the resident operands within budget."""
    g_max = max(1, 128 // max(E, 1))
    for g in range(g_max, 0, -1):
        if M % g:
            continue
        resid = ((g * KD) * (g * KR) + (g * KR) * (g * E) + (g * KR)) * itemsize
        if resid <= resident_budget:
            return g
    return 1


def _pick_tm(m_rows, row_bytes, tile_budget):
    """Tile height: fill tile_budget with double-buffered (x + out) tiles, but
    keep >= 2 grid steps so a 2-TC chip (v7x) shards the parallel axis."""
    tm = tile_budget // max(2 * row_bytes, 1)
    tm = max(_ROW_ALIGN, min(_MAX_TM, tm))
    tm -= tm % _ROW_ALIGN
    if m_rows <= _ROW_ALIGN:
        return m_rows                      # single full-extent block ((8,128) waived)
    per_core = -(-m_rows // 2)             # ceil(m/2)
    per_core = -(-per_core // 16) * 16     # sublane-align (works for f32 and bf16)
    tm = min(tm, per_core)
    return max(16, tm)


def _compiler_params(tile_bytes_per_step, resident_bytes, vmem_cap):
    # double-buffered streamed tiles + (conservatively double-buffered) residents
    need = 2 * tile_bytes_per_step + 2 * resident_bytes + (4 << 20)
    limit = int(min(max(need, 32 << 20), int(vmem_cap * 0.70)))
    return pltpu.CompilerParams(dimension_semantics=("parallel",),
                                vmem_limit_bytes=limit)


# ------------------------------- wrapper -------------------------------------

def bin_embedding_encoder(x, embedding, bias, weights, *,
                          nonlinear=True, decoder_activation='relu',
                          gelu_approximate=False, stream_dtype=None,
                          tm=None, x_buffer_count=None):
    """x: (n, b, K, D); embedding: (D, R); bias: (1, 1, K, R); weights: (K, R, E)."""
    n, b, K, D = x.shape
    D2, R = embedding.shape
    assert D2 == D
    K2, R2, E = weights.shape
    assert K2 == K and R2 == R
    if nonlinear and decoder_activation not in ('relu', 'gelu'):
        raise ValueError(f'decoder_activation {decoder_activation} not supported')

    out_dtype = x.dtype
    if stream_dtype is not None:
        x = x.astype(stream_dtype)
        embedding = embedding.astype(stream_dtype)
        bias = bias.astype(stream_dtype)
        weights = weights.astype(stream_dtype)

    M = n * b
    KD, KR = K * D, K * R
    itemsize = jnp.dtype(x.dtype).itemsize

    vmem_cap = _vmem_capacity_bytes()
    resident_budget = max(vmem_cap // 8, 8 << 20)
    tile_budget = max(vmem_cap // 4, 8 << 20)

    # Lane-dense G-fold (free contiguous reshape, no HBM transpose / copy).
    G = _pick_g(M, E, KD, KR, itemsize, resident_budget)
    Mg = M // G
    GKD, GKR, GE = G * KD, G * KR, G * E
    x2 = x.reshape(Mg, GKD)

    row_bytes = (GKD + GE) * itemsize
    if tm is None:
        tm = _pick_tm(Mg, row_bytes, tile_budget)
    # Partial last block: Pallas clips the boundary store -- no jnp.pad needed.
    grid_m = pl.cdiv(Mg, tm)

    x_spec_kwargs = {}
    if x_buffer_count is not None:
        x_spec_kwargs['pipeline_mode'] = pl.Buffered(x_buffer_count)
    x_spec = pl.BlockSpec((tm, GKD), lambda i: (i, 0), **x_spec_kwargs)
    out_spec = pl.BlockSpec((tm, GE), lambda i: (i, 0))

    eye_g = jnp.eye(G, dtype=x.dtype)

    if nonlinear:
        # Block-diagonal embedding over (G*K) blocks: absorbs both the K
        # reduction and the G fold into one matmul (grid stays 1-D over rows).
        eye_gk = jnp.eye(G * K, dtype=x.dtype)
        e_blk = jnp.einsum('ab,dr->adbr', eye_gk,
                           embedding).reshape(GKD, GKR)
        bias2 = jnp.tile(bias.reshape(1, KR), (1, G))
        w2 = jnp.einsum('gh,kre->gkrhe', eye_g, weights).reshape(GKR, GE)
        resident_bytes = (e_blk.size + bias2.size + w2.size) * itemsize
        # TODO(synk): if residents exceed VMEM for huge K, switch to a K-grid
        # accumulator layout instead of the block-diagonal trick.

        kernel = functools.partial(_kernel_nonlinear,
                                   decoder_activation=decoder_activation,
                                   gelu_approximate=gelu_approximate)
        out = pl.pallas_call(
            kernel,
            out_shape=jax.ShapeDtypeStruct((Mg, GE), out_dtype),
            grid_spec=pltpu.PrefetchScalarGridSpec(
                num_scalar_prefetch=0,
                grid=(grid_m,),
                in_specs=[
                    x_spec,                                      # streamed
                    pl.BlockSpec((GKD, GKR), lambda i: (0, 0)),  # resident
                    pl.BlockSpec((1, GKR), lambda i: (0, 0)),    # resident
                    pl.BlockSpec((GKR, GE), lambda i: (0, 0)),   # resident
                ],
                out_specs=out_spec,
            ),
            compiler_params=_compiler_params(tm * row_bytes, resident_bytes,
                                             vmem_cap),
        )(x2, e_blk, bias2, w2)
    else:
        # out = x @ block-diag_G(E_blk @ W2): one fused (G*KD, G*E) matmul.
        w_fused = jnp.einsum('dr,kre->kde', embedding, weights).reshape(KD, E)
        w_fused_g = jnp.einsum('gh,ce->gche', eye_g, w_fused).reshape(GKD, GE)
        resident_bytes = w_fused_g.size * itemsize
        out = pl.pallas_call(
            _kernel_linear,
            out_shape=jax.ShapeDtypeStruct((Mg, GE), out_dtype),
            grid_spec=pltpu.PrefetchScalarGridSpec(
                num_scalar_prefetch=0,
                grid=(grid_m,),
                in_specs=[x_spec,
                          pl.BlockSpec((GKD, GE), lambda i: (0, 0))],
                out_specs=out_spec,
            ),
            compiler_params=_compiler_params(tm * row_bytes, resident_bytes,
                                             vmem_cap),
        )(x2, w_fused_g)

    return out.reshape(n, b, E)


# ------------------------------- reference -----------------------------------

def bin_embedding_encoder_ref(x, embedding, bias, weights, *,
                              nonlinear=True, decoder_activation='relu',
                              gelu_approximate=False):
    embedded = jnp.einsum('nbkd,dr->nbkr', x, embedding)
    if nonlinear:
        embedded = embedded + bias
        if decoder_activation == 'relu':
            embedded = jax.nn.relu(embedded)
        elif decoder_activation == 'gelu':
            embedded = jax.nn.gelu(embedded, approximate=gelu_approximate)
        else:
            raise ValueError(f'decoder_activation {decoder_activation} not supported')
    return jnp.einsum('nbkr,kre->nbe', embedded, weights)


if __name__ == "__main__":
    # Module-consistent small shapes: num_features=4, emsize=32, n_bins=16, rank=8.
    num_features, emsize, n_bins, rank = 4, 32, 16, 8
    key = jax.random.PRNGKey(0)
    kx, ke, kb, kw, kx2 = jax.random.split(key, 5)

    embedding = jax.random.normal(ke, (n_bins, rank), dtype=jnp.float32)
    bias = jax.random.normal(kb, (1, 1, num_features, rank), dtype=jnp.float32)
    weights = jax.random.normal(kw, (num_features, rank, emsize), dtype=jnp.float32)

    # --- small case (n=2, b=8): single-tile path, G-fold = 4 -----------------
    n, b = 2, 8
    x = jax.random.normal(kx, (n, b, num_features, n_bins), dtype=jnp.float32)

    out = jax.block_until_ready(bin_embedding_encoder(x, embedding, bias, weights))
    ref = bin_embedding_encoder_ref(x, embedding, bias, weights)
    assert out.shape == (n, b, emsize)
    assert jnp.allclose(out, ref, atol=1e-4, rtol=1e-4), "relu path mismatch"

    out_g = jax.block_until_ready(bin_embedding_encoder(
        x, embedding, bias, weights, decoder_activation='gelu',
        gelu_approximate=True))
    ref_g = bin_embedding_encoder_ref(x, embedding, bias, weights,
                                      decoder_activation='gelu',
                                      gelu_approximate=True)
    assert jnp.allclose(out_g, ref_g, atol=1e-4, rtol=1e-4), "gelu path mismatch"

    out_lin = jax.block_until_ready(bin_embedding_encoder(
        x, embedding, bias, weights, nonlinear=False))
    ref_lin = bin_embedding_encoder_ref(x, embedding, bias, weights, nonlinear=False)
    assert jnp.allclose(out_lin, ref_lin, atol=1e-4, rtol=1e-4), "linear path mismatch"

    # --- larger case: multi-step grid + partial (masked) last block ----------
    n2, b2 = 4, 300                      # M=1200 -> G=4 -> 300 folded rows
    x_big = jax.random.normal(kx2, (n2, b2, num_features, n_bins), dtype=jnp.float32)
    out_big = jax.block_until_ready(bin_embedding_encoder(
        x_big, embedding, bias, weights, tm=128))   # grid=3, last block = 44 rows
    ref_big = bin_embedding_encoder_ref(x_big, embedding, bias, weights)
    assert out_big.shape == (n2, b2, emsize)
    assert jnp.allclose(out_big, ref_big, atol=1e-3, rtol=1e-3), \
        "partial-last-block mismatch"

    # --- optional bf16 streaming (looser, relative-L2 check) -----------------
    out_bf16 = jax.block_until_ready(bin_embedding_encoder(
        x_big, embedding, bias, weights, stream_dtype=jnp.bfloat16))
    rel = (jnp.linalg.norm(out_bf16.astype(jnp.float32) - ref_big)
           / jnp.linalg.norm(ref_big))
    assert float(rel) < 2e-2, f"bf16 streaming rel-L2 error too high: {float(rel)}"

    print("KERNEL_OK")
</pallas_src>

<mosaic_0001>
module attributes {stable_mosaic.version = 11 : i64} {
  func.func @_kernel_nonlinear(%arg0: i32, %arg1: memref<4x256xf32, #tpu.memory_space<vmem>>, %arg2: memref<256x128xf32, #tpu.memory_space<vmem>>, %arg3: memref<1x128xf32, #tpu.memory_space<vmem>>, %arg4: memref<128x128xf32, #tpu.memory_space<vmem>>, %arg5: memref<4x128xf32, #tpu.memory_space<vmem>>) attributes {dimension_semantics = [#tpu.dimension_semantics<parallel>], iteration_bounds = array<i64: 1>, scalar_prefetch = 0 : i64, scratch_operands = 0 : i64, tpu.core_type = #tpu.core_type<tc>, window_params = [{transform_indices = @transform_0, window_bounds = array<i64: 4, 256>}, {pipeline_mode = #tpu.pipeline_mode<synchronous>, transform_indices = @transform_1, window_bounds = array<i64: 256, 128>}, {pipeline_mode = #tpu.pipeline_mode<synchronous>, transform_indices = @transform_2, window_bounds = array<i64: 1, 128>}, {pipeline_mode = #tpu.pipeline_mode<synchronous>, transform_indices = @transform_3, window_bounds = array<i64: 128, 128>}, {transform_indices = @transform_4, window_bounds = array<i64: 4, 128>}]} {
    %c0 = arith.constant 0 : index
    %c0_0 = arith.constant 0 : index
    %0 = vector.load %arg1[%c0, %c0_0] : memref<4x256xf32, #tpu.memory_space<vmem>>, vector<4x256xf32>
    %c0_1 = arith.constant 0 : index
    %c0_2 = arith.constant 0 : index
    %1 = vector.load %arg2[%c0_1, %c0_2] : memref<256x128xf32, #tpu.memory_space<vmem>>, vector<256x128xf32>
    %cst = arith.constant dense<0.000000e+00> : vector<4x128xf32>
    %2 = tpu.matmul %0, %1, %cst {dimension_numbers = #tpu.dot_dimension_numbers<[1], [0], [0], [1], [0, 0, 1, 1], [], []>} : vector<4x256xf32>, vector<256x128xf32>, vector<4x128xf32> -> vector<4x128xf32>
    %c0_3 = arith.constant 0 : index
    %c0_4 = arith.constant 0 : index
    %3 = vector.load %arg3[%c0_3, %c0_4] : memref<1x128xf32, #tpu.memory_space<vmem>>, vector<1x128xf32>
    %4 = vector.broadcast %3 : vector<1x128xf32> to vector<4x128xf32>
    %5 = arith.addf %2, %4 : vector<4x128xf32>
    %cst_5 = arith.constant 0.000000e+00 : f32
    %6 = vector.broadcast %cst_5 : f32 to vector<4x128xf32>
    %7 = arith.maximumf %5, %6 : vector<4x128xf32>
    %c0_6 = arith.constant 0 : index
    %c0_7 = arith.constant 0 : index
    %8 = vector.load %arg4[%c0_6, %c0_7] : memref<128x128xf32, #tpu.memory_space<vmem>>, vector<128x128xf32>
    %cst_8 = arith.constant dense<0.000000e+00> : vector<4x128xf32>
    %9 = tpu.matmul %7, %8, %cst_8 {dimension_numbers = #tpu.dot_dimension_numbers<[1], [0], [0], [1], [0, 0, 1, 1], [], []>} : vector<4x128xf32>, vector<128x128xf32>, vector<4x128xf32> -> vector<4x128xf32>
    %c0_9 = arith.constant 0 : index
    %c0_10 = arith.constant 0 : index
    %10 = vector.load %arg5[%c0_9, %c0_10] : memref<4x128xf32, #tpu.memory_space<vmem>>, vector<4x128xf32>
    tpu.vector_store %arg5[%c0_9, %c0_10], %9 {strides = array<i32>} : memref<4x128xf32, #tpu.memory_space<vmem>>, vector<4x128xf32>,
    return
  }
  func.func @transform_0(%arg0: i32) -> (i32, i32) {
    %c0_i32 = arith.constant 0 : i32
    %c0_i32_0 = arith.constant 0 : i32
    return %arg0, %c0_i32 : i32, i32
  }
  func.func @transform_1(%arg0: i32) -> (i32, i32) {
    %c0_i32 = arith.constant 0 : i32
    %c0_i32_0 = arith.constant 0 : i32
    %c0_i32_1 = arith.constant 0 : i32
    return %c0_i32, %c0_i32_0 : i32, i32
  }
  func.func @transform_2(%arg0: i32) -> (i32, i32) {
    %c0_i32 = arith.constant 0 : i32
    %c0_i32_0 = arith.constant 0 : i32
    %c0_i32_1 = arith.constant 0 : i32
    return %c0_i32, %c0_i32_0 : i32, i32
  }
  func.func @transform_3(%arg0: i32) -> (i32, i32) {
    %c0_i32 = arith.constant 0 : i32
    %c0_i32_0 = arith.constant 0 : i32
    %c0_i32_1 = arith.constant 0 : i32
    return %c0_i32, %c0_i32_0 : i32, i32
  }
  func.func @transform_4(%arg0: i32) -> (i32, i32) {
    %c0_i32 = arith.constant 0 : i32
    %c0_i32_0 = arith.constant 0 : i32
    return %arg0, %c0_i32 : i32, i32
  }
}

</mosaic_0001>

<llo_original>
// kernel: tpu_custom_call.1
$region0: #{tpu_custom_call.1}
  #allocation0 [shape = 'u32[]', space=smem, size = 0x4, offset = 0x4, fixed_abs, tag = 'smem constant byte address 0x4 - core index']
  #allocation1 [shape = 'u32[144,128]{1,0:T(1,128)}', space=vmem, size = 0x12000, scoped, tag = 'internal scratch']
  %s0 = inlined_call_operand.hbm [shape: f32[4,256], index: 0, kind: input, shape index: {}]
  %s1 = inlined_call_operand.hbm [shape: f32[256,128], index: 1, kind: input, shape index: {}]
  %s2 = inlined_call_operand.vmem [shape: f32[1,128], index: 2, kind: input, shape index: {}]
  %s3 = inlined_call_operand.hbm [shape: f32[128,128], index: 3, kind: input, shape index: {}]
  %s4 = inlined_call_operand.hbm [shape: f32[4,128], index: 4, kind: output, shape index: {}]
  %s5 = sld [smem:[#allocation0]]
  $region38: #{tpu_custom_call.1} parent=0
    _
  %s7 = ssub.s32 1, %s5
  %s8 = scalar_select 0, %s7, %s5
  $region1: #{tpu_custom_call.1} parent=0
    #allocation2 [shape = 'u8[4096]{0}', space=vmem, size = 0x1000, scoped, tag = 'input window, operand 0, single buffered']
    #allocation3 [shape = 's32[1]{0}', space=sflag, size = 0x4, scoped, tag = 'scoped memory for tpu_custom_call.1']
    #allocation4 [shape = 's32[1]{0}', space=sflag, size = 0x4, scoped, tag = 'scoped memory for tpu_custom_call.1']
    #allocation5 [shape = 'u8[131072]{0}', space=vmem, size = 0x20000, scoped, tag = 'input window, operand 1, single buffered']
    #allocation6 [shape = 's32[1]{0}', space=sflag, size = 0x4, scoped, tag = 'scoped memory for tpu_custom_call.1']
    #allocation7 [shape = 'u8[65536]{0}', space=vmem, size = 0x10000, scoped, tag = 'input window, operand 3, single buffered']
    #allocation8 [shape = 'u8[2048]{0}', space=vmem, size = 0x800, scoped, tag = 'output window, operand 0, single buffered']
    %9 = vsyncpa [#allocation3], 0
    %10 = vsyncpa [#allocation6], 0
    %11 = vsyncpa [#allocation4], 0
    // Predicated region
    $region2: #{tpu_custom_call.1} parent=1 // pred_check
      _
    $region3: #{tpu_custom_call.1} parent=1 // pred_check_branch
      %13 = sbr.rel (0) target = $region5
    $region4: #{tpu_custom_call.1} parent=1 // pred_region
      %s15 = ssub.s32 128, 128
      %16 = vsyncadd [#allocation3], %s15
      %s18 = sshll.u32 [#allocation2], 4
      %s19 = int_to_ptr.vmem [resolvable:$true] %s18
      %21 = dma.hbm_to_vmem [thread:$0]  %s0, 128, %s19, [#allocation3]
    $region5: #{tpu_custom_call.1} parent=1 // pred_fallthru
      _
    // Predicated region
    $region6: #{tpu_custom_call.1} parent=1 // pred_check
      _
    $region7: #{tpu_custom_call.1} parent=1 // pred_check_branch
      %23 = sbr.rel (0) target = $region9
    $region8: #{tpu_custom_call.1} parent=1 // pred_region
      %s25 = ssub.s32 4096, 4096
      %26 = vsyncadd [#allocation6], %s25
      %s27 = sshll.u32 [#allocation5], 4
      %s28 = int_to_ptr.vmem [resolvable:$true] %s27
      %33 = dma.hbm_to_vmem [thread:$0]  %s1, 4096, %s28, [#allocation6], 128, 128, 8
    $region9: #{tpu_custom_call.1} parent=1 // pred_fallthru
      _
    // Predicated region
    $region10: #{tpu_custom_call.1} parent=1 // pred_check
      _
    $region11: #{tpu_custom_call.1} parent=1 // pred_check_branch
      %35 = sbr.rel (0) target = $region13
    $region12: #{tpu_custom_call.1} parent=1 // pred_region
      _
    $region13: #{tpu_custom_call.1} parent=1 // pred_fallthru
      _
    // Predicated region
    $region14: #{tpu_custom_call.1} parent=1 // pred_check
      _
    $region15: #{tpu_custom_call.1} parent=1 // pred_check_branch
      %37 = sbr.rel (0) target = $region17
    $region16: #{tpu_custom_call.1} parent=1 // pred_region
      %s39 = ssub.s32 2048, 2048
      %40 = vsyncadd [#allocation6], %s39
      %s41 = sshll.u32 [#allocation7], 4
      %s42 = int_to_ptr.vmem [resolvable:$true] %s41
      %47 = dma.hbm_to_vmem [thread:$0]  %s3, 2048, %s42, [#allocation6], 128, 128, 8
    $region17: #{tpu_custom_call.1} parent=1 // pred_fallthru
      _
    // Predicated region
    $region18: #{tpu_custom_call.1} parent=1 // pred_check
      _
    $region19: #{tpu_custom_call.1} parent=1 // pred_check_branch
      %49 = sbr.rel (0) target = $region21
    $region20: #{tpu_custom_call.1} parent=1 // pred_region
      %50 = dma.done [#allocation3], 128
    $region21: #{tpu_custom_call.1} parent=1 // pred_fallthru
      _
    // Predicated region
    $region22: #{tpu_custom_call.1} parent=1 // pred_check
      _
    $region23: #{tpu_custom_call.1} parent=1 // pred_check_branch
      %52 = sbr.rel (0) target = $region25
    $region24: #{tpu_custom_call.1} parent=1 // pred_region
      %53 = dma.done [#allocation6], 4096
    $region25: #{tpu_custom_call.1} parent=1 // pred_fallthru
      _
    // Predicated region
    $region26: #{tpu_custom_call.1} parent=1 // pred_check
      _
    $region27: #{tpu_custom_call.1} parent=1 // pred_check_branch
      %55 = sbr.rel (0) target = $region29
    $region28: #{tpu_custom_call.1} parent=1 // pred_region
      %56 = dma.done [#allocation6], 2048
    $region29: #{tpu_custom_call.1} parent=1 // pred_fallthru
      _
    %v57 = vld [vmem:[#allocation2] sm:$0xff]
    %v58 = vld [vmem:[#allocation5] sm:$0xff]
    %v59 = vld [vmem:[#allocation5 + $0x8] sm:$0xff]
    %v60 = vld [vmem:[#allocation5 + $0x10] sm:$0xff]
    %v61 = vld [vmem:[#allocation5 + $0x18] sm:$0xff]
    %v62 = vld [vmem:[#allocation5 + $0x20] sm:$0xff]
    %v63 = vld [vmem:[#allocation5 + $0x28] sm:$0xff]
    %v64 = vld [vmem:[#allocation5 + $0x30] sm:$0xff]
    %v65 = vld [vmem:[#allocation5 + $0x38] sm:$0xff]
    %v66 = vld [vmem:[#allocation5 + $0x40] sm:$0xff]
    %v67 = vld [vmem:[#allocation5 + $0x48] sm:$0xff]
    %v68 = vld [vmem:[#allocation5 + $0x50] sm:$0xff]
    %v69 = vld [vmem:[#allocation5 + $0x58] sm:$0xff]
    %v70 = vld [vmem:[#allocation5 + $0x60] sm:$0xff]
    %v71 = vld [vmem:[#allocation5 + $0x68] sm:$0xff]
    %v72 = vld [vmem:[#allocation5 + $0x70] sm:$0xff]
    %v73 = vld [vmem:[#allocation5 + $0x78] sm:$0xff]
    %v74 = vld [vmem:[#allocation5 + $0x80] sm:$0xff]
    %v75 = vld [vmem:[#allocation5 + $0x88] sm:$0xff]
    %v76 = vld [vmem:[#allocation5 + $0x90] sm:$0xff]
    %v77 = vld [vmem:[#allocation5 + $0x98] sm:$0xff]
    %v78 = vld [vmem:[#allocation5 + $0xa0] sm:$0xff]
    %v79 = vld [vmem:[#allocation5 + $0xa8] sm:$0xff]
    %v80 = vld [vmem:[#allocation5 + $0xb0] sm:$0xff]
    %v81 = vld [vmem:[#allocation5 + $0xb8] sm:$0xff]
    %v82 = vld [vmem:[#allocation5 + $0xc0] sm:$0xff]
    %v83 = vld [vmem:[#allocation5 + $0xc8] sm:$0xff]
    %v84 = vld [vmem:[#allocation5 + $0xd0] sm:$0xff]
    %v85 = vld [vmem:[#allocation5 + $0xd8] sm:$0xff]
    %v86 = vld [vmem:[#allocation5 + $0xe0] sm:$0xff]
    %v87 = vld [vmem:[#allocation5 + $0xe8] sm:$0xff]
    %v88 = vld [vmem:[#allocation5 + $0xf0] sm:$0xff]
    %v89 = vld [vmem:[#allocation5 + $0xf8] sm:$0xff]
    %v90 = vld [vmem:[%s2] sm:$0x1]
    %v92 = vlaneseq
    %v93 = vshrl.u32 %v92, 7
    %v94 = vsub.s32 0, %v93
    %v95 = vrot.slane %v90, %v94
    %v98 = vcombine.high %v57, %v57
    %100 = vmatprep.subr.mxu0 0.0
    %101 = vmatpush1.msra.mxu0 %v73
    %102 = vmatprep.subr.mxu0 0.0
    %103 = vmatpush1.msra.mxu0 %v72
    %104 = vmatprep.subr.mxu0 0.0
    %105 = vmatpush1.msra.mxu0 %v71
    %106 = vmatprep.subr.mxu0 0.0
    %107 = vmatpush1.msra.mxu0 %v70
    %108 = vmatprep.subr.mxu0 0.0
    %109 = vmatpush1.msra.mxu0 %v69
    %110 = vmatprep.subr.mxu0 0.0
    %111 = vmatpush1.msra.mxu0 %v68
    %112 = vmatprep.subr.mxu0 0.0
    %113 = vmatpush1.msra.mxu0 %v67
    %114 = vmatprep.subr.mxu0 0.0
    %115 = vmatpush1.msra.mxu0 %v66
    %116 = vmatprep.subr.mxu0 0.0
    %117 = vmatpush1.msra.mxu0 %v65
    %118 = vmatprep.subr.mxu0 0.0
    %119 = vmatpush1.msra.mxu0 %v64
    %120 = vmatprep.subr.mxu0 0.0
    %121 = vmatpush1.msra.mxu0 %v63
    %122 = vmatprep.subr.mxu0 0.0
    %123 = vmatpush1.msra.mxu0 %v62
    %124 = vmatprep.subr.mxu0 0.0
    %125 = vmatpush1.msra.mxu0 %v61
    %126 = vmatprep.subr.mxu0 0.0
    %127 = vmatpush1.msra.mxu0 %v60
    %128 = vmatprep.subr.mxu0 0.0
    %129 = vmatpush1.msra.mxu0 %v59
    %130 = vmatprep.subr.mxu0 0.0
    %131 = vmatpush1.msra.mxu0 %v58
    %132 = vmatprep.subr.mxu0 0.0
    %133 = vmatpush2.msra.mxu0 %v89
    %134 = vmatprep.subr.mxu0 0.0
    %135 = vmatpush2.msra.mxu0 %v88
    %136 = vmatprep.subr.mxu0 0.0
    %137 = vmatpush2.msra.mxu0 %v87
    %138 = vmatprep.subr.mxu0 0.0
    %139 = vmatpush2.msra.mxu0 %v86
    %140 = vmatprep.subr.mxu0 0.0
    %141 = vmatpush2.msra.mxu0 %v85
    %142 = vmatprep.subr.mxu0 0.0
    %143 = vmatpush2.msra.mxu0 %v84
    %144 = vmatprep.subr.mxu0 0.0
    %145 = vmatpush2.msra.mxu0 %v83
    %146 = vmatprep.subr.mxu0 0.0
    %147 = vmatpush2.msra.mxu0 %v82
    %148 = vmatprep.subr.mxu0 0.0
    %149 = vmatpush2.msra.mxu0 %v81
    %150 = vmatprep.subr.mxu0 0.0
    %151 = vmatpush2.msra.mxu0 %v80
    %152 = vmatprep.subr.mxu0 0.0
    %153 = vmatpush2.msra.mxu0 %v79
    %154 = vmatprep.subr.mxu0 0.0
    %155 = vmatpush2.msra.mxu0 %v78
    %156 = vmatprep.subr.mxu0 0.0
    %157 = vmatpush2.msra.mxu0 %v77
    %158 = vmatprep.subr.mxu0 0.0
    %159 = vmatpush2.msra.mxu0 %v76
    %160 = vmatprep.subr.mxu0 0.0
    %161 = vmatpush2.msra.mxu0 %v75
    %162 = vmatprep.subr.mxu0 0.0
    %163 = vmatpush2.msra.mxu0 %v74
    %164 = vmatprep.mubr.f32.mxu0 %v98
    %165 = vmatmul.mubr.f32.gmra.mxu0 %v57
    %v166 = vpop.f32.mrf.mxu0
    %v167 = vadd.f32 %v95, %v166
    %v168 = vpop.f32.mrf.mxu0
    %169 = vdwg.mxu0
    %v170 = vmax.f32 %v167, 0.0
    %v171 = vld [vmem:[#allocation7] sm:$0xff]
    %v172 = vld [vmem:[#allocation7 + $0x8] sm:$0xff]
    %v173 = vld [vmem:[#allocation7 + $0x10] sm:$0xff]
    %v174 = vld [vmem:[#allocation7 + $0x18] sm:$0xff]
    %v175 = vld [vmem:[#allocation7 + $0x20] sm:$0xff]
    %v176 = vld [vmem:[#allocation7 + $0x28] sm:$0xff]
    %v177 = vld [vmem:[#allocation7 + $0x30] sm:$0xff]
    %v178 = vld [vmem:[#allocation7 + $0x38] sm:$0xff]
    %v179 = vld [vmem:[#allocation7 + $0x40] sm:$0xff]
    %v180 = vld [vmem:[#allocation7 + $0x48] sm:$0xff]
    %v181 = vld [vmem:[#allocation7 + $0x50] sm:$0xff]
    %v182 = vld [vmem:[#allocation7 + $0x58] sm:$0xff]
    %v183 = vld [vmem:[#allocation7 + $0x60] sm:$0xff]
    %v184 = vld [vmem:[#allocation7 + $0x68] sm:$0xff]
    %v185 = vld [vmem:[#allocation7 + $0x70] sm:$0xff]
    %v186 = vld [vmem:[#allocation7 + $0x78] sm:$0xff]
    %187 = vmatprep.subr.mxu0 0.0
    %188 = vmatpush1.msra.mxu0 %v186
    %189 = vmatprep.subr.mxu0 0.0
    %190 = vmatpush1.msra.mxu0 %v185
    %191 = vmatprep.subr.mxu0 0.0
    %192 = vmatpush1.msra.mxu0 %v184
    %193 = vmatprep.subr.mxu0 0.0
    %194 = vmatpush1.msra.mxu0 %v183
    %195 = vmatprep.subr.mxu0 0.0
    %196 = vmatpush1.msra.mxu0 %v182
    %197 = vmatprep.subr.mxu0 0.0
    %198 = vmatpush1.msra.mxu0 %v181
    %199 = vmatprep.subr.mxu0 0.0
    %200 = vmatpush1.msra.mxu0 %v180
    %201 = vmatprep.subr.mxu0 0.0
    %202 = vmatpush1.msra.mxu0 %v179
    %203 = vmatprep.subr.mxu0 0.0
    %204 = vmatpush1.msra.mxu0 %v178
    %205 = vmatprep.subr.mxu0 0.0
    %206 = vmatpush1.msra.mxu0 %v177
    %207 = vmatprep.subr.mxu0 0.0
    %208 = vmatpush1.msra.mxu0 %v176
    %209 = vmatprep.subr.mxu0 0.0
    %210 = vmatpush1.msra.mxu0 %v175
    %211 = vmatprep.subr.mxu0 0.0
    %212 = vmatpush1.msra.mxu0 %v174
    %213 = vmatprep.subr.mxu0 0.0
    %214 = vmatpush1.msra.mxu0 %v173
    %215 = vmatprep.subr.mxu0 0.0
    %216 = vmatpush1.msra.mxu0 %v172
    %217 = vmatprep.subr.mxu0 0.0
    %218 = vmatpush1.msra.mxu0 %v171
    %219 = vmatprep.subr.mxu0 0.0
    %220 = vmatpush2.msra.mxu0 0.0
    %221 = vmatprep.subr.mxu0 0.0
    %222 = vmatpush2.msra.mxu0 0.0
    %223 = vmatprep.subr.mxu0 0.0
    %224 = vmatpush2.msra.mxu0 0.0
    %225 = vmatprep.subr.mxu0 0.0
    %226 = vmatpush2.msra.mxu0 0.0
    %227 = vmatprep.subr.mxu0 0.0
    %228 = vmatpush2.msra.mxu0 0.0
    %229 = vmatprep.subr.mxu0 0.0
    %230 = vmatpush2.msra.mxu0 0.0
    %231 = vmatprep.subr.mxu0 0.0
    %232 = vmatpush2.msra.mxu0 0.0
    %233 = vmatprep.subr.mxu0 0.0
    %234 = vmatpush2.msra.mxu0 0.0
    %235 = vmatprep.subr.mxu0 0.0
    %236 = vmatpush2.msra.mxu0 0.0
    %237 = vmatprep.subr.mxu0 0.0
    %238 = vmatpush2.msra.mxu0 0.0
    %239 = vmatprep.subr.mxu0 0.0
    %240 = vmatpush2.msra.mxu0 0.0
    %241 = vmatprep.subr.mxu0 0.0
    %242 = vmatpush2.msra.mxu0 0.0
    %243 = vmatprep.subr.mxu0 0.0
    %244 = vmatpush2.msra.mxu0 0.0
    %245 = vmatprep.subr.mxu0 0.0
    %246 = vmatpush2.msra.mxu0 0.0
    %247 = vmatprep.subr.mxu0 0.0
    %248 = vmatpush2.msra.mxu0 0.0
    %249 = vmatprep.subr.mxu0 0.0
    %250 = vmatpush2.msra.mxu0 0.0
    %251 = vmatprep.mubr.f32.mxu0 0.0
    %252 = vmatmul.mubr.f32.gmra.mxu0 %v170
    %v253 = vpop.f32.mrf.mxu0
    %v254 = vadd.f32 0.0, %v253
    %v255 = vpop.f32.mrf.mxu0
    %256 = vdwg.mxu0
    %257 = vst [vmem:[#allocation8] sm:$0xf] %v254
    // Predicated region
    $region30: #{tpu_custom_call.1} parent=1 // pred_check
      _
    $region31: #{tpu_custom_call.1} parent=1 // pred_check_branch
      %259 = sbr.rel (0) target = $region33
    $region32: #{tpu_custom_call.1} parent=1 // pred_region
      %s261 = ssub.s32 64, 64
      %262 = vsyncadd [#allocation4], %s261
      %s264 = sshll.u32 [#allocation8], 4
      %s265 = int_to_ptr.vmem [resolvable:$true] %s264
      %267 = dma.vmem_to_hbm [thread:$0]  %s265, 64, %s4, [#allocation4]
    $region33: #{tpu_custom_call.1} parent=1 // pred_fallthru
      _
    // Predicated region
    $region34: #{tpu_custom_call.1} parent=1 // pred_check
      _
    $region35: #{tpu_custom_call.1} parent=1 // pred_check_branch
      %269 = sbr.rel (0) target = $region37
    $region36: #{tpu_custom_call.1} parent=1 // pred_region
      %270 = dma.done [#allocation4], 64
    $region37: #{tpu_custom_call.1} parent=1 // pred_fallthru
      _
    %271 = vsyncpa [#allocation3], 1
    %272 = vsyncpa [#allocation6], 1
    %273 = vsyncpa [#allocation4], 1

</llo_original>
